<compile_context>
chip_gen: v5e
topology: v5e:2x2
jax: 0.10.0
libtpu: 0.0.40
codegen_flags: <defaults>
</compile_context>

<pallas_src>
import jax
import jax.numpy as jnp
from jax.experimental import pallas as pl
from jax.experimental.pallas import tpu as pltpu

_LANE = 128


def _round_down(v: int, m: int) -> int:
    return (v // m) * m


def _truncation_kernel(x_ref, o_ref):
    # x_ref: (tile_b, fetch_cols) VMEM tile  (fetch_cols >= out_features)
    # o_ref: (tile_b, out_features) VMEM tile
    out_features = o_ref.shape[-1]
    if x_ref.shape[-1] == out_features:
        # Fetched exactly the kept prefix -> straight copy.
        o_ref[...] = x_ref[...]
    else:
        # Fetched a 128-lane-aligned superset -> static in-kernel slice.
        o_ref[...] = x_ref[:, :out_features]


def truncation_layer(x: jax.Array, out_features: int,
                     block_batch: int | None = None,
                     force_kernel: bool = False) -> jax.Array:
    """Pallas equivalent of TruncationLayer(out_features)(x) for 2-D x."""
    batch, in_features = x.shape
    assert 0 < out_features <= in_features
    dtype_bytes = jnp.dtype(x.dtype).itemsize

    # Fast path (a): nothing truncated -> identity, no copy at all.
    if out_features == in_features:
        return x

    # Input fetch width: kept prefix rounded up to a 128-lane multiple so the
    # BlockSpec (8,128) divisibility rule holds; clamp to the full row width.
    fetch_cols = ((out_features + _LANE - 1) // _LANE) * _LANE
    if fetch_cols >= in_features:
        fetch_cols = in_features

    # Fast path (b): the rounded prefix covers the whole row, so the kernel
    # reads exactly what XLA would -> let XLA slice (and possibly fuse) instead.
    if fetch_cols == in_features and not force_kernel:
        return x[:, :out_features]

    # dtype-native sublane multiple: f32 -> 8, bf16/f16 -> 16, int8/fp8 -> 32.
    sublane = max(8, 32 // max(dtype_bytes, 1))

    # --- Batch tile: target ~8 MiB of combined (in + out) bytes per grid step.
    if block_batch is None:
        bytes_per_row = (fetch_cols + out_features) * dtype_bytes
        target_bytes = 8 * 1024 * 1024
        tb = max(sublane, _round_down(target_bytes // max(bytes_per_row, 1), sublane))
        block_batch = min(batch, tb)
    block_batch = min(block_batch, batch)

    # Ensure >= 2 grid steps when the batch permits, so a "parallel" axis can
    # actually be sharded across v7x's two TensorCores (harmless on v5e/v6e).
    half = _round_down(batch // 2, sublane)
    if half >= sublane:
        block_batch = min(block_batch, half)

    # Legality: second-to-last block dim must be a multiple of 8 or the full axis.
    if block_batch != batch and block_batch % 8 != 0:
        block_batch = max(8, _round_down(block_batch, 8))
        block_batch = min(block_batch, batch)

    grid = (pl.cdiv(batch, block_batch),)

    # Scoped-VMEM limit: double-buffered in+out blocks plus headroom, capped so
    # it never crowds v7x's 64 MiB physical VMEM.
    block_bytes = block_batch * (fetch_cols + out_features) * dtype_bytes
    vmem_limit = int(2 * block_bytes * 1.25) + (1 << 20)
    vmem_limit = max(vmem_limit, 16 << 20)
    vmem_limit = min(vmem_limit, 48 << 20)

    cost = pl.CostEstimate(
        flops=0,
        transcendentals=0,
        bytes_accessed=(batch * fetch_cols + batch * out_features) * dtype_bytes,
    )

    return pl.pallas_call(
        _truncation_kernel,
        out_shape=jax.ShapeDtypeStruct((batch, out_features), x.dtype),
        grid_spec=pl.GridSpec(
            grid=grid,
            in_specs=[pl.BlockSpec((block_batch, fetch_cols), lambda i: (i, 0))],
            out_specs=pl.BlockSpec((block_batch, out_features), lambda i: (i, 0)),
        ),
        compiler_params=pltpu.CompilerParams(
            dimension_semantics=("parallel",),   # independent row blocks
            vmem_limit_bytes=vmem_limit,
        ),
        cost_estimate=cost,
    )(x)


if __name__ == "__main__":
    key = jax.random.PRNGKey(0)
    k0, k1, k2 = jax.random.split(key, 3)

    # Case 1: tiny shape matching the original demo.  fetch_cols rounds past
    # in_features, so this takes the XLA-slice fast path (no kernel launch).
    batch, in_features, out_features = 8, 32, 16
    x = jax.random.normal(k0, (batch, in_features), dtype=jnp.float32)
    y = truncation_layer(x, out_features)
    jax.block_until_ready(y)
    assert y.shape == (batch, out_features)
    assert y.dtype == x.dtype
    assert jnp.array_equal(y, x[:, :out_features])

    # Case 1b: same tiny shape but force the Pallas kernel (full-width fetch
    # branch of the kernel) to make sure that path also lowers and runs.
    y_f = truncation_layer(x, out_features, force_kernel=True)
    jax.block_until_ready(y_f)
    assert jnp.array_equal(y_f, x[:, :out_features])

    # Case 2: lane-aligned split where the kernel really DMAs only the kept
    # prefix (fetch_cols = 128 < in_features = 256) and the grid has 2 steps.
    batch2, in2, out2 = 64, 256, 128
    x2 = jax.random.normal(k1, (batch2, in2), dtype=jnp.float32)
    y2 = truncation_layer(x2, out2)
    jax.block_until_ready(y2)
    assert jnp.array_equal(y2, x2[:, :out2])

    # Case 3: bf16 input exercising the dtype-aware sublane rounding
    # (sublane multiple of 16) and an uneven tail row block.
    batch3, in3, out3 = 48, 384, 256
    x3 = jax.random.normal(k2, (batch3, in3)).astype(jnp.bfloat16)
    y3 = truncation_layer(x3, out3)
    jax.block_until_ready(y3)
    assert y3.dtype == jnp.bfloat16
    assert jnp.array_equal(y3, x3[:, :out3])

    print("KERNEL_OK")
</pallas_src>

<mosaic_0001>
module attributes {stable_mosaic.version = 11 : i64} {
  func.func @_truncation_kernel(%arg0: i32, %arg1: memref<8x32xf32, #tpu.memory_space<vmem>>, %arg2: memref<8x16xf32, #tpu.memory_space<vmem>>) attributes {dimension_semantics = [#tpu.dimension_semantics<parallel>], iteration_bounds = array<i64: 1>, scalar_prefetch = 0 : i64, scratch_operands = 0 : i64, tpu.core_type = #tpu.core_type<tc>, window_params = [{transform_indices = @transform_0, window_bounds = array<i64: 8, 32>}, {transform_indices = @transform_1, window_bounds = array<i64: 8, 16>}]} {
    %c0 = arith.constant 0 : index
    %c0_0 = arith.constant 0 : index
    %0 = vector.load %arg1[%c0, %c0_0] : memref<8x32xf32, #tpu.memory_space<vmem>>, vector<8x16xf32>
    %c0_1 = arith.constant 0 : index
    %c0_2 = arith.constant 0 : index
    %1 = vector.load %arg2[%c0_1, %c0_2] : memref<8x16xf32, #tpu.memory_space<vmem>>, vector<8x16xf32>
    tpu.vector_store %arg2[%c0_1, %c0_2], %0 {strides = array<i32>} : memref<8x16xf32, #tpu.memory_space<vmem>>, vector<8x16xf32>,
    return
  }
  func.func @transform_0(%arg0: i32) -> (i32, i32) {
    %c0_i32 = arith.constant 0 : i32
    %c0_i32_0 = arith.constant 0 : i32
    return %arg0, %c0_i32 : i32, i32
  }
  func.func @transform_1(%arg0: i32) -> (i32, i32) {
    %c0_i32 = arith.constant 0 : i32
    %c0_i32_0 = arith.constant 0 : i32
    return %arg0, %c0_i32 : i32, i32
  }
}

</mosaic_0001>

<llo_original>
// kernel: tpu_custom_call.1
$region0: #{tpu_custom_call.1}
  #allocation0 [shape = 'u32[]', space=smem, size = 0x4, offset = 0x4, fixed_abs, tag = 'smem constant byte address 0x4 - core index']
  #allocation1 [shape = 'u32[72,128]{1,0:T(1,128)}', space=vmem, size = 0x9000, scoped, tag = 'internal scratch']
  %s0 = inlined_call_operand.hbm [shape: f32[8,32], index: 0, kind: input, shape index: {}]
  %s1 = inlined_call_operand.hbm [shape: f32[8,16], index: 1, kind: output, shape index: {}]
  %s2 = sld [smem:[#allocation0]]
  $region18: #{tpu_custom_call.1} parent=0
    _
  %s4 = ssub.s32 1, %s2
  %s5 = scalar_select 0, %s4, %s2
  $region1: #{tpu_custom_call.1} parent=0
    #allocation2 [shape = 'u8[4096]{0}', space=vmem, size = 0x1000, scoped, tag = 'input window, operand 0, single buffered']
    #allocation3 [shape = 's32[1]{0}', space=sflag, size = 0x4, scoped, tag = 'scoped memory for tpu_custom_call.1']
    #allocation4 [shape = 's32[1]{0}', space=sflag, size = 0x4, scoped, tag = 'scoped memory for tpu_custom_call.1']
    #allocation5 [shape = 'u8[4096]{0}', space=vmem, size = 0x1000, scoped, tag = 'output window, operand 0, single buffered']
    %6 = vsyncpa [#allocation3], 0
    %7 = vsyncpa [#allocation4], 0
    // Predicated region
    $region2: #{tpu_custom_call.1} parent=1 // pred_check
      _
    $region3: #{tpu_custom_call.1} parent=1 // pred_check_branch
      %9 = sbr.rel (0) target = $region5
    $region4: #{tpu_custom_call.1} parent=1 // pred_region
      %11 = vsyncadd [#allocation3], 0
      %s13 = sshll.u32 %s0, 4
      %s14 = int_to_ptr.hbm [resolvable:$true] %s13
      %s15 = sshll.u32 [#allocation2], 4
      %s16 = int_to_ptr.vmem [resolvable:$true] %s15
      %18 = dma.hbm_to_vmem [thread:$0]  %s14, 128, %s16, [#allocation3]
    $region5: #{tpu_custom_call.1} parent=1 // pred_fallthru
      _
    // Predicated region
    $region6: #{tpu_custom_call.1} parent=1 // pred_check
      _
    $region7: #{tpu_custom_call.1} parent=1 // pred_check_branch
      %20 = sbr.rel (0) target = $region9
    $region8: #{tpu_custom_call.1} parent=1 // pred_region
      %22 = dma.done [#allocation3], 128
    $region9: #{tpu_custom_call.1} parent=1 // pred_fallthru
      _
    %v23 = vld [vmem:[#allocation2] sm:$0xff]
    %vm24 = vcmask 130048
    %25 = vst.msk [vmem:[#allocation5] sm:$0xff] %vm24, %v23
    // Predicated region
    $region10: #{tpu_custom_call.1} parent=1 // pred_check
      _
    $region11: #{tpu_custom_call.1} parent=1 // pred_check_branch
      %27 = sbr.rel (0) target = $region13
    $region12: #{tpu_custom_call.1} parent=1 // pred_region
      %29 = vsyncadd [#allocation4], 0
      %s31 = sshll.u32 [#allocation5], 4
      %s32 = int_to_ptr.vmem [resolvable:$true] %s31
      %s33 = sshll.u32 %s1, 4
      %s34 = int_to_ptr.hbm [resolvable:$true] %s33
      %36 = dma.vmem_to_hbm [thread:$0]  %s32, 128, %s34, [#allocation4]
    $region13: #{tpu_custom_call.1} parent=1 // pred_fallthru
      _
    // Predicated region
    $region14: #{tpu_custom_call.1} parent=1 // pred_check
      _
    $region15: #{tpu_custom_call.1} parent=1 // pred_check_branch
      %38 = sbr.rel (0) target = $region17
    $region16: #{tpu_custom_call.1} parent=1 // pred_region
      %40 = dma.done [#allocation4], 128
    $region17: #{tpu_custom_call.1} parent=1 // pred_fallthru
      _
    %41 = vsyncpa [#allocation3], 1
    %42 = vsyncpa [#allocation4], 1

</llo_original>
